<compile_context>
chip_gen: v7x
topology: tpu7x:2x2x1
jax: 0.10.0
libtpu: 0.0.40
codegen_flags: <defaults>
</compile_context>

<pallas_src>
import jax
import jax.numpy as jnp
from jax.experimental import pallas as pl
from jax.experimental.pallas import tpu as pltpu


def _round_up(x, m):
    return (x + m - 1) // m * m


def _fuse_linear_kernel(obj_ref, lang_ref, w_obj_ref, w_lang_ref, b_ref, o_ref):
    """out = [obj | lang] @ [W_obj ; W_lang] + b without materializing concat."""
    acc = jnp.dot(obj_ref[...].astype(w_obj_ref.dtype), w_obj_ref[...],
                  preferred_element_type=jnp.float32)
    acc = acc + jnp.dot(lang_ref[...].astype(w_lang_ref.dtype), w_lang_ref[...],
                        preferred_element_type=jnp.float32)
    acc = acc + b_ref[...]                       # [1, D_out_p] f32 broadcast
    o_ref[...] = acc.astype(o_ref.dtype)


def make_fuse_encoder(weight, bias, d_obj, *, block_b=512,
                      param_dtype=jnp.bfloat16):
    """One-time parameter prep + jitted forward for FuseEncoder.

    weight: [D_out, D_in] (PyTorch nn.Linear layout), bias: [D_out].
    d_obj: feature width of obj_language; language has width D_in - d_obj.
    Returns forward(obj_language [B, d_obj], language [B, d_lang]) -> [B, D_out].
    """
    d_out, d_in = weight.shape
    d_lang = d_in - d_obj
    assert 0 < d_obj < d_in
    d_out_p = _round_up(d_out, 128)              # lane-dense output stores

    # One-time prep: transpose to [D_in, D_out], zero-pad D_out, cast to bf16,
    # pre-split along K so the kernel never slices the sublane-packed weight.
    w_t = jnp.asarray(weight, dtype=jnp.float32).T           # [d_in, d_out]
    if d_out_p != d_out:
        w_t = jnp.pad(w_t, ((0, 0), (0, d_out_p - d_out)))
    w_t = w_t.astype(param_dtype)
    w_obj = w_t[:d_obj]                                       # [d_obj, d_out_p]
    w_lang = w_t[d_obj:]                                       # [d_lang, d_out_p]
    b_p = jnp.zeros((1, d_out_p), dtype=jnp.float32)
    b_p = b_p.at[0, :d_out].set(jnp.asarray(bias, dtype=jnp.float32))

    @jax.jit
    def forward(obj_language, language):
        b = obj_language.shape[0]
        assert obj_language.shape == (b, d_obj)
        assert language.shape == (b, d_lang)
        out_dtype = obj_language.dtype

        # Batch tile: multiple of 8 rows; force >= 2 grid steps when the batch
        # allows so a 2-TensorCore chip (v7x) can split the "parallel" axis.
        tb = min(block_b, _round_up(b, 8))
        if b > 8 and pl.cdiv(b, tb) < 2:
            tb = max(8, _round_up(pl.cdiv(b, 2), 8))
        grid = (pl.cdiv(b, tb),)

        act_bytes = jnp.dtype(obj_language.dtype).itemsize
        lang_bytes = jnp.dtype(language.dtype).itemsize
        out_bytes = jnp.dtype(out_dtype).itemsize
        w_bytes = jnp.dtype(param_dtype).itemsize

        # VMEM budget: double-buffered activations/output, single-buffered
        # resident params, headroom; capped at 64 MiB (v7x physical VMEM).
        vmem_needed = (
            2 * tb * d_obj * act_bytes
            + 2 * tb * d_lang * lang_bytes
            + d_obj * d_out_p * w_bytes
            + d_lang * d_out_p * w_bytes
            + 8 * d_out_p * 4
            + 2 * tb * d_out_p * out_bytes
        )
        vmem_limit = int(min(max(int(vmem_needed * 1.5) + (1 << 20),
                                 32 * 1024 * 1024),
                             64 * 1024 * 1024))

        cost = pl.CostEstimate(
            flops=2 * b * d_in * d_out_p,
            transcendentals=0,
            bytes_accessed=(b * d_obj * act_bytes + b * d_lang * lang_bytes
                            + d_in * d_out_p * w_bytes + d_out_p * 4
                            + b * d_out_p * out_bytes),
        )

        resident = pl.Buffered(1)   # constant-index blocks: no double buffer
        out_p = pl.pallas_call(
            _fuse_linear_kernel,
            out_shape=jax.ShapeDtypeStruct((b, d_out_p), out_dtype),
            grid=grid,
            in_specs=[
                pl.BlockSpec((tb, d_obj), lambda i: (i, 0)),          # batch tile
                pl.BlockSpec((tb, d_lang), lambda i: (i, 0)),         # batch tile
                pl.BlockSpec((d_obj, d_out_p), lambda i: (0, 0),
                             pipeline_mode=resident),                  # resident
                pl.BlockSpec((d_lang, d_out_p), lambda i: (0, 0),
                             pipeline_mode=resident),                  # resident
                pl.BlockSpec((1, d_out_p), lambda i: (0, 0),
                             pipeline_mode=resident),                  # resident
            ],
            out_specs=pl.BlockSpec((tb, d_out_p), lambda i: (i, 0)),
            compiler_params=pltpu.CompilerParams(
                dimension_semantics=("parallel",),
                vmem_limit_bytes=vmem_limit),
            cost_estimate=cost,
        )(obj_language, language, w_obj, w_lang, b_p)

        if d_out_p != d_out:
            out_p = out_p[:, :d_out]
        return out_p

    return forward


def _run_case(key, b, d_obj, d_lang, d_out, block_b):
    d_in = d_obj + d_lang
    k_obj, k_lang, k_w, k_b = jax.random.split(key, 4)
    obj_language = jax.random.normal(k_obj, (b, d_obj), dtype=jnp.float32)
    language = jax.random.normal(k_lang, (b, d_lang), dtype=jnp.float32)

    # Deterministic nn.Linear-style init: U(-1/sqrt(fan_in), 1/sqrt(fan_in)).
    bound = 1.0 / (d_in ** 0.5)
    weight = jax.random.uniform(k_w, (d_out, d_in),
                                minval=-bound, maxval=bound, dtype=jnp.float32)
    bias = jax.random.uniform(k_b, (d_out,),
                              minval=-bound, maxval=bound, dtype=jnp.float32)

    # Pure-JAX f32 reference (concat + linear).
    ref = jnp.concatenate([obj_language, language], axis=1) @ weight.T + bias

    fwd = make_fuse_encoder(weight, bias, d_obj, block_b=block_b)
    out = jax.block_until_ready(fwd(obj_language, language))
    assert out.shape == (b, d_out)
    # bf16 weights/activations with f32 accumulation -> bf16-level tolerance.
    return bool(jnp.allclose(out, ref, atol=5e-2, rtol=5e-2))


if __name__ == "__main__":
    key = jax.random.PRNGKey(0)
    k1, k2 = jax.random.split(key)

    ok = True
    # Multi-tile batch grid (tb=8 -> 4 grid steps), lane-aligned D_out.
    ok &= _run_case(k1, b=32, d_obj=128, d_lang=128, d_out=128, block_b=8)
    # Default block_b path (grid forced to 2 steps) + D_out padding to 128.
    ok &= _run_case(k2, b=16, d_obj=64, d_lang=64, d_out=96, block_b=512)
    assert ok

    print("KERNEL_OK")
</pallas_src>

<mosaic_0001>
module attributes {stable_mosaic.version = 11 : i64} {
  func.func @_fuse_linear_kernel(%arg0: i32, %arg1: memref<8x128xf32, #tpu.memory_space<vmem>>, %arg2: memref<8x128xf32, #tpu.memory_space<vmem>>, %arg3: memref<128x128xbf16, #tpu.memory_space<vmem>>, %arg4: memref<128x128xbf16, #tpu.memory_space<vmem>>, %arg5: memref<1x128xf32, #tpu.memory_space<vmem>>, %arg6: memref<8x128xf32, #tpu.memory_space<vmem>>) attributes {dimension_semantics = [#tpu.dimension_semantics<parallel>], iteration_bounds = array<i64: 4>, scalar_prefetch = 0 : i64, scratch_operands = 0 : i64, tpu.core_type = #tpu.core_type<tc>, window_params = [{transform_indices = @transform_0, window_bounds = array<i64: 8, 128>}, {transform_indices = @transform_1, window_bounds = array<i64: 8, 128>}, {pipeline_mode = #tpu.pipeline_mode<synchronous>, transform_indices = @transform_2, window_bounds = array<i64: 128, 128>}, {pipeline_mode = #tpu.pipeline_mode<synchronous>, transform_indices = @transform_3, window_bounds = array<i64: 128, 128>}, {pipeline_mode = #tpu.pipeline_mode<synchronous>, transform_indices = @transform_4, window_bounds = array<i64: 1, 128>}, {transform_indices = @transform_5, window_bounds = array<i64: 8, 128>}]} {
    %c0 = arith.constant 0 : index
    %c0_0 = arith.constant 0 : index
    %0 = vector.load %arg1[%c0, %c0_0] : memref<8x128xf32, #tpu.memory_space<vmem>>, vector<8x128xf32>
    %1 = arith.truncf %0 : vector<8x128xf32> to vector<8x128xbf16>
    %c0_1 = arith.constant 0 : index
    %c0_2 = arith.constant 0 : index
    %2 = vector.load %arg3[%c0_1, %c0_2] : memref<128x128xbf16, #tpu.memory_space<vmem>>, vector<128x128xbf16>
    %cst = arith.constant dense<0.000000e+00> : vector<8x128xf32>
    %3 = tpu.matmul %1, %2, %cst {dimension_numbers = #tpu.dot_dimension_numbers<[1], [0], [0], [1], [0, 0, 1, 1], [], []>} : vector<8x128xbf16>, vector<128x128xbf16>, vector<8x128xf32> -> vector<8x128xf32>
    %c0_3 = arith.constant 0 : index
    %c0_4 = arith.constant 0 : index
    %4 = vector.load %arg2[%c0_3, %c0_4] : memref<8x128xf32, #tpu.memory_space<vmem>>, vector<8x128xf32>
    %5 = arith.truncf %4 : vector<8x128xf32> to vector<8x128xbf16>
    %c0_5 = arith.constant 0 : index
    %c0_6 = arith.constant 0 : index
    %6 = vector.load %arg4[%c0_5, %c0_6] : memref<128x128xbf16, #tpu.memory_space<vmem>>, vector<128x128xbf16>
    %cst_7 = arith.constant dense<0.000000e+00> : vector<8x128xf32>
    %7 = tpu.matmul %5, %6, %cst_7 {dimension_numbers = #tpu.dot_dimension_numbers<[1], [0], [0], [1], [0, 0, 1, 1], [], []>} : vector<8x128xbf16>, vector<128x128xbf16>, vector<8x128xf32> -> vector<8x128xf32>
    %8 = arith.addf %3, %7 : vector<8x128xf32>
    %c0_8 = arith.constant 0 : index
    %c0_9 = arith.constant 0 : index
    %9 = vector.load %arg5[%c0_8, %c0_9] : memref<1x128xf32, #tpu.memory_space<vmem>>, vector<1x128xf32>
    %10 = vector.broadcast %9 : vector<1x128xf32> to vector<8x128xf32>
    %11 = arith.addf %8, %10 : vector<8x128xf32>
    %c0_10 = arith.constant 0 : index
    %c0_11 = arith.constant 0 : index
    %12 = vector.load %arg6[%c0_10, %c0_11] : memref<8x128xf32, #tpu.memory_space<vmem>>, vector<8x128xf32>
    tpu.vector_store %arg6[%c0_10, %c0_11], %11 {strides = array<i32>} : memref<8x128xf32, #tpu.memory_space<vmem>>, vector<8x128xf32>,
    return
  }
  func.func @transform_0(%arg0: i32) -> (i32, i32) {
    %c0_i32 = arith.constant 0 : i32
    %c0_i32_0 = arith.constant 0 : i32
    return %arg0, %c0_i32 : i32, i32
  }
  func.func @transform_1(%arg0: i32) -> (i32, i32) {
    %c0_i32 = arith.constant 0 : i32
    %c0_i32_0 = arith.constant 0 : i32
    return %arg0, %c0_i32 : i32, i32
  }
  func.func @transform_2(%arg0: i32) -> (i32, i32) {
    %c0_i32 = arith.constant 0 : i32
    %c0_i32_0 = arith.constant 0 : i32
    %c0_i32_1 = arith.constant 0 : i32
    return %c0_i32, %c0_i32_0 : i32, i32
  }
  func.func @transform_3(%arg0: i32) -> (i32, i32) {
    %c0_i32 = arith.constant 0 : i32
    %c0_i32_0 = arith.constant 0 : i32
    %c0_i32_1 = arith.constant 0 : i32
    return %c0_i32, %c0_i32_0 : i32, i32
  }
  func.func @transform_4(%arg0: i32) -> (i32, i32) {
    %c0_i32 = arith.constant 0 : i32
    %c0_i32_0 = arith.constant 0 : i32
    %c0_i32_1 = arith.constant 0 : i32
    return %c0_i32, %c0_i32_0 : i32, i32
  }
  func.func @transform_5(%arg0: i32) -> (i32, i32) {
    %c0_i32 = arith.constant 0 : i32
    %c0_i32_0 = arith.constant 0 : i32
    return %arg0, %c0_i32 : i32, i32
  }
}

</mosaic_0001>

<llo_original>
// kernel: forward.1
$region0: #{forward.1}
  #allocation0 [shape = 'u32[]', space=smem, size = 0x4, offset = 0x4, fixed_abs, tag = 'smem constant byte address 0x4 - core index']
  #allocation1 [shape = 'u32[144,128]{1,0:T(1,128)}', space=vmem, size = 0x12000, scoped, tag = 'internal scratch']
  %s0 = inlined_call_operand.hbm [shape: f32[32,128], index: 0, kind: input, shape index: {}]
  %s1 = inlined_call_operand.hbm [shape: f32[32,128], index: 1, kind: input, shape index: {}]
  %s2 = inlined_call_operand.hbm [shape: bf16[128,128], index: 2, kind: input, shape index: {}]
  %s3 = inlined_call_operand.hbm [shape: bf16[128,128], index: 3, kind: input, shape index: {}]
  %s4 = inlined_call_operand.vmem [shape: f32[1,128], index: 4, kind: input, shape index: {}]
  %s5 = inlined_call_operand.hbm [shape: f32[32,128], index: 5, kind: output, shape index: {}]
  %s6 = sld [smem:[#allocation0]]
  $region69: #{forward.1} parent=0
    _
  %s8 = ssub.s32 1, %s6
  %s9 = scalar_select 0, %s8, %s6
  $region1: #{forward.1} parent=0
    #allocation2 [shape = 'u8[8192]{0}', space=vmem, size = 0x2000, scoped, tag = 'input window, operand 0']
    #allocation3 [shape = 's32[2]{0}', space=sflag, size = 0x8, scoped, tag = 'scoped memory for forward.1']
    #allocation4 [shape = 's32[2]{0}', space=sflag, size = 0x8, scoped, tag = 'scoped memory for forward.1']
    #allocation5 [shape = 'u8[8192]{0}', space=vmem, size = 0x2000, scoped, tag = 'input window, operand 1']
    #allocation6 [shape = 's32[2]{0}', space=sflag, size = 0x8, scoped, tag = 'scoped memory for forward.1']
    #allocation7 [shape = 'u8[32768]{0}', space=vmem, size = 0x8000, scoped, tag = 'input window, operand 2, single buffered']
    #allocation8 [shape = 'u8[32768]{0}', space=vmem, size = 0x8000, scoped, tag = 'input window, operand 3, single buffered']
    #allocation9 [shape = 's32[1]{0}', space=sflag, size = 0x4, scoped, tag = 'scoped memory for forward.1']
    #allocation10 [shape = 'u8[8192]{0}', space=vmem, size = 0x2000, scoped, tag = 'output window, operand 0']
    %10 = vsyncpa [#allocation3], 0
    %s11 = scalar_lea.sflag [#allocation3], 1
    %12 = vsyncpa %s11, 0
    %13 = vsyncpa [#allocation6], 0
    %s14 = scalar_lea.sflag [#allocation6], 1
    %15 = vsyncpa %s14, 0
    %16 = vsyncpa [#allocation9], 0
    %17 = vsyncpa [#allocation4], 0
    %s18 = scalar_lea.sflag [#allocation4], 1
    %19 = vsyncpa %s18, 0
    loop: start=0, step=1, limit=6
    $region2: #{forward.1} parent=1 // loop_pre_header
      _
    $region3: #{forward.1} parent=1 // loop_header
      %s21 = sphi 0, %s25
      %p22 = scmp.ge.s32.totalorder %s21, 6
      %s31 = sphi 0, %s33
      %s34 = sphi 0, %s31
      %s35 = sphi 0, %s34
      %s51 = sphi 0, %s35
      %s57 = sphi 0, %s59
      %s60 = sphi 0, %s57
      %s61 = sphi 0, %s60
      %s77 = sphi 0, %s61
      %s81 = sphi 0, %s81
      %s83 = sphi 0, %s81
      %s84 = sphi 0, %s83
      %s98 = sphi 0, %s84
      %s102 = sphi 0, %s102
      %s104 = sphi 0, %s102
      %s105 = sphi 0, %s104
      %s119 = sphi 0, %s105
      %s123 = sphi 0, %s123
      %s125 = sphi 0, %s123
      %s126 = sphi 0, %s125
      %s140 = sphi 0, %s126
      %s146 = sphi 0, %s148
      %s149 = sphi 0, %s146
      %s150 = sphi 0, %s149
      %s166 = sphi 0, %s150
    $region4: #{forward.1} parent=1 // loop_header_branch
      %24 = sbr.rel (%p22) target = $region8
    $region5: #{forward.1} parent=1 // loop_body
      %s26 = ssub.s32 %s21, 1
      %s27 = ssub.s32 %s21, 2
      %s28 = sadd.s32 %s21, 1
      %s29 = ssub.s32 %s21, %s28
      %p30 = scmp.eq.s32.totalorder %s29, 0
      %s32 = sadd.s32 %s31, 1
      %s33 = scalar_select %p30, %s31, %s32
      %p36 = pneg %p30
      %p37 = scmp.eq.s32.totalorder %s21, 3
      %p38 = por %p36, %p37
      %p39 = scmp.ne.s32.totalorder %s31, %s34
      %p40 = scmp.eq.s32.totalorder %s21, 0
      %p41 = por %p39, %p40
      %p42 = scmp.ne.s32.totalorder %s31, %s34
      %p43 = scmp.eq.s32.totalorder %s26, 3
      %p44 = por %p42, %p43
      %p45 = scmp.ne.s32.totalorder %s34, %s35
      %p46 = scmp.eq.s32.totalorder %s26, 0
      %p47 = por %p45, %p46
      %p48 = scmp.ne.s32.totalorder %s34, %s35
      %p49 = scmp.eq.s32.totalorder %s27, 3
      %p50 = por %p48, %p49
      %p52 = scmp.ne.s32.totalorder %s35, %s51
      %p53 = scmp.eq.s32.totalorder %s27, 0
      %p54 = por %p52, %p53
      %s55 = ssub.s32 %s21, %s28
      %p56 = scmp.eq.s32.totalorder %s55, 0
      %s58 = sadd.s32 %s57, 1
      %s59 = scalar_select %p56, %s57, %s58
      %p62 = pneg %p56
      %p63 = scmp.eq.s32.totalorder %s21, 3
      %p64 = por %p62, %p63
      %p65 = scmp.ne.s32.totalorder %s57, %s60
      %p66 = scmp.eq.s32.totalorder %s21, 0
      %p67 = por %p65, %p66
      %p68 = scmp.ne.s32.totalorder %s57, %s60
      %p69 = scmp.eq.s32.totalorder %s26, 3
      %p70 = por %p68, %p69
      %p71 = scmp.ne.s32.totalorder %s60, %s61
      %p72 = scmp.eq.s32.totalorder %s26, 0
      %p73 = por %p71, %p72
      %p74 = scmp.ne.s32.totalorder %s60, %s61
      %p75 = scmp.eq.s32.totalorder %s27, 3
      %p76 = por %p74, %p75
      %p78 = scmp.ne.s32.totalorder %s61, %s77
      %p79 = scmp.eq.s32.totalorder %s27, 0
      %p80 = por %p78, %p79
      %s82 = sadd.s32 %s81, 1
      %p85 = scmp.eq.s32.totalorder %s21, 3
      %p86 = scmp.ne.s32.totalorder %s81, %s83
      %p87 = scmp.eq.s32.totalorder %s21, 0
      %p88 = por %p86, %p87
      %p89 = scmp.ne.s32.totalorder %s81, %s83
      %p90 = scmp.eq.s32.totalorder %s26, 3
      %p91 = por %p89, %p90
      %p92 = scmp.ne.s32.totalorder %s83, %s84
      %p93 = scmp.eq.s32.totalorder %s26, 0
      %p94 = por %p92, %p93
      %p95 = scmp.ne.s32.totalorder %s83, %s84
      %p96 = scmp.eq.s32.totalorder %s27, 3
      %p97 = por %p95, %p96
      %p99 = scmp.ne.s32.totalorder %s84, %s98
      %p100 = scmp.eq.s32.totalorder %s27, 0
      %p101 = por %p99, %p100
      %s103 = sadd.s32 %s102, 1
      %p106 = scmp.eq.s32.totalorder %s21, 3
      %p107 = scmp.ne.s32.totalorder %s102, %s104
      %p108 = scmp.eq.s32.totalorder %s21, 0
      %p109 = por %p107, %p108
      %p110 = scmp.ne.s32.totalorder %s102, %s104
      %p111 = scmp.eq.s32.totalorder %s26, 3
      %p112 = por %p110, %p111
      %p113 = scmp.ne.s32.totalorder %s104, %s105
      %p114 = scmp.eq.s32.totalorder %s26, 0
      %p115 = por %p113, %p114
      %p116 = scmp.ne.s32.totalorder %s104, %s105
      %p117 = scmp.eq.s32.totalorder %s27, 3
      %p118 = por %p116, %p117
      %p120 = scmp.ne.s32.totalorder %s105, %s119
      %p121 = scmp.eq.s32.totalorder %s27, 0
      %p122 = por %p120, %p121
      %s124 = sadd.s32 %s123, 1
      %p127 = scmp.eq.s32.totalorder %s21, 3
      %p128 = scmp.ne.s32.totalorder %s123, %s125
      %p129 = scmp.eq.s32.totalorder %s21, 0
      %p130 = por %p128, %p129
      %p131 = scmp.ne.s32.totalorder %s123, %s125
      %p132 = scmp.eq.s32.totalorder %s26, 3
      %p133 = por %p131, %p132
      %p134 = scmp.ne.s32.totalorder %s125, %s126
      %p135 = scmp.eq.s32.totalorder %s26, 0
      %p136 = por %p134, %p135
      %p137 = scmp.ne.s32.totalorder %s125, %s126
      %p138 = scmp.eq.s32.totalorder %s27, 3
      %p139 = por %p137, %p138
      %p141 = scmp.ne.s32.totalorder %s126, %s140
      %p142 = scmp.eq.s32.totalorder %s27, 0
      %p143 = por %p141, %p142
      %s144 = ssub.s32 %s21, %s28
      %p145 = scmp.eq.s32.totalorder %s144, 0
      %s147 = sadd.s32 %s146, 1
      %s148 = scalar_select %p145, %s146, %s147
      %p151 = pneg %p145
      %p152 = scmp.eq.s32.totalorder %s21, 3
      %p153 = por %p151, %p152
      %p154 = scmp.ne.s32.totalorder %s146, %s149
      %p155 = scmp.eq.s32.totalorder %s21, 0
      %p156 = por %p154, %p155
      %p157 = scmp.ne.s32.totalorder %s146, %s149
      %p158 = scmp.eq.s32.totalorder %s26, 3
      %p159 = por %p157, %p158
      %p160 = scmp.ne.s32.totalorder %s149, %s150
      %p161 = scmp.eq.s32.totalorder %s26, 0
      %p162 = por %p160, %p161
      %p163 = scmp.ne.s32.totalorder %s149, %s150
      %p164 = scmp.eq.s32.totalorder %s27, 3
      %p165 = por %p163, %p164
      %p167 = scmp.ne.s32.totalorder %s150, %s166
      %p168 = scmp.eq.s32.totalorder %s27, 0
      %p169 = por %p167, %p168
      %p170 = scmp.le.s32.totalorder 1, %s21
      %p171 = scmp.lt.s32.totalorder %s21, 5
      %p172 = pnand %p170, %p171
      %p173 = pneg %p172
      // Predicated region
      $region9: #{forward.1} parent=5 // pred_check
        _
      $region10: #{forward.1} parent=5 // pred_check_branch
        %175 = sbr.rel (%p172) target = $region12
      $region11: #{forward.1} parent=5 // pred_region
        %s176 = ssub.s32 %s21, 1
        // Predicated region
        $region13: #{forward.1} parent=11 // pred_check
          %p177 = pneg %p94
        $region14: #{forward.1} parent=11 // pred_check_branch
          %179 = sbr.rel (%p177) target = $region16
        $region15: #{forward.1} parent=11 // pred_region
          %s181 = ssub.s32 1024, 1024
          %182 = vsyncadd [#allocation6], %s181
          %s183 = sshll.u32 [#allocation7], 4
          %s184 = int_to_ptr.vmem [resolvable:$true] %s183
          %189 = dma.hbm_to_vmem [thread:$0]  %s2, 1024, %s184, [#allocation6], 64, 64, 4
        $region16: #{forward.1} parent=11 // pred_fallthru
          _
        // Predicated region
        $region17: #{forward.1} parent=11 // pred_check
          %p190 = pneg %p115
        $region18: #{forward.1} parent=11 // pred_check_branch
          %192 = sbr.rel (%p190) target = $region20
        $region19: #{forward.1} parent=11 // pred_region
          %s194 = ssub.s32 1024, 1024
          %195 = vsyncadd [#allocation9], %s194
          %s196 = sshll.u32 [#allocation8], 4
          %s197 = int_to_ptr.vmem [resolvable:$true] %s196
          %202 = dma.hbm_to_vmem [thread:$0]  %s3, 1024, %s197, [#allocation9], 64, 64, 4
        $region20: #{forward.1} parent=11 // pred_fallthru
          _
        // Predicated region
        $region21: #{forward.1} parent=11 // pred_check
          %p203 = pneg %p136
        $region22: #{forward.1} parent=11 // pred_check_branch
          %205 = sbr.rel (%p203) target = $region24
        $region23: #{forward.1} parent=11 // pred_region
          _
        $region24: #{forward.1} parent=11 // pred_fallthru
          _
      $region12: #{forward.1} parent=5 // pred_fallthru
        _
      %p206 = scmp.lt.s32.totalorder %s21, 4
      // Predicated region
      $region25: #{forward.1} parent=5 // pred_check
        %p207 = pneg %p206
      $region26: #{forward.1} parent=5 // pred_check_branch
        %209 = sbr.rel (%p207) target = $region28
      $region27: #{forward.1} parent=5 // pred_region
        // Predicated region
        $region29: #{forward.1} parent=27 // pred_check
          %p210 = pneg %p41
        $region30: #{forward.1} parent=27 // pred_check_branch
          %212 = sbr.rel (%p210) target = $region32
        $region31: #{forward.1} parent=27 // pred_region
          %s213 = sand.u32 %s31, 1
          %s214 = scalar_lea.sflag [#allocation3], %s213
          %s215 = sand.u32 %s31, 1
          %s216 = smul.addr %s215, 8
          %s217 = scalar_lea.vmem [#allocation2], %s216
          %s219 = ssub.s32 128, 128
          %220 = vsyncadd %s214, %s219
          %s221 = smul.addr %s21, 128
          %s222 = scalar_lea.hbm %s0, %s221
          %s224 = sshll.u32 %s217, 4
          %s225 = int_to_ptr.vmem [resolvable:$true] %s224
          %227 = dma.hbm_to_vmem [thread:$0]  %s222, 128, %s225, %s214
        $region32: #{forward.1} parent=27 // pred_fallthru
          _
        // Predicated region
        $region33: #{forward.1} parent=27 // pred_check
          %p228 = pneg %p67
        $region34: #{forward.1} parent=27 // pred_check_branch
          %230 = sbr.rel (%p228) target = $region36
        $region35: #{forward.1} parent=27 // pred_region
          %s231 = sand.u32 %s21, 1
          %s232 = scalar_lea.sflag [#allocation6], %s231
          %s233 = sand.u32 %s57, 1
          %s234 = smul.addr %s233, 8
          %s235 = scalar_lea.vmem [#allocation5], %s234
          %s237 = ssub.s32 128, 128
          %238 = vsyncadd %s232, %s237
          %s239 = smul.addr %s21, 128
          %s240 = scalar_lea.hbm %s1, %s239
          %s242 = sshll.u32 %s235, 4
          %s243 = int_to_ptr.vmem [resolvable:$true] %s242
          %245 = dma.hbm_to_vmem [thread:$0]  %s240, 128, %s243, %s232
        $region36: #{forward.1} parent=27 // pred_fallthru
          _
      $region28: #{forward.1} parent=5 // pred_fallthru
        _
      %p246 = scmp.le.s32.totalorder 1, %s21
      %p247 = scmp.lt.s32.totalorder %s21, 5
      %p248 = pnand %p246, %p247
      %p249 = pneg %p248
      // Predicated region
      $region37: #{forward.1} parent=5 // pred_check
        _
      $region38: #{forward.1} parent=5 // pred_check_branch
        %251 = sbr.rel (%p248) target = $region40
      $region39: #{forward.1} parent=5 // pred_region
        %s252 = ssub.s32 %s21, 1
        %s253 = sand.u32 %s34, 1
        %s254 = scalar_lea.sflag [#allocation3], %s253
        %s255 = sand.u32 %s34, 1
        %s256 = smul.addr %s255, 8
        %s257 = scalar_lea.vmem [#allocation2], %s256
        // Predicated region
        $region41: #{forward.1} parent=39 // pred_check
          %p258 = pneg %p47
        $region42: #{forward.1} parent=39 // pred_check_branch
          %260 = sbr.rel (%p258) target = $region44
        $region43: #{forward.1} parent=39 // pred_region
          %261 = dma.done %s254, 128
        $region44: #{forward.1} parent=39 // pred_fallthru
          _
        %s262 = sand.u32 %s26, 1
        %s263 = scalar_lea.sflag [#allocation6], %s262
        %s264 = sand.u32 %s60, 1
        %s265 = smul.addr %s264, 8
        %s266 = scalar_lea.vmem [#allocation5], %s265
        // Predicated region
        $region45: #{forward.1} parent=39 // pred_check
          %p267 = pneg %p73
        $region46: #{forward.1} parent=39 // pred_check_branch
          %269 = sbr.rel (%p267) target = $region48
        $region47: #{forward.1} parent=39 // pred_region
          %270 = dma.done %s263, 128
        $region48: #{forward.1} parent=39 // pred_fallthru
          _
        // Predicated region
        $region49: #{forward.1} parent=39 // pred_check
          %p271 = pneg %p94
        $region50: #{forward.1} parent=39 // pred_check_branch
          %273 = sbr.rel (%p271) target = $region52
        $region51: #{forward.1} parent=39 // pred_region
          %274 = dma.done [#allocation6], 1024
        $region52: #{forward.1} parent=39 // pred_fallthru
          _
        // Predicated region
        $region53: #{forward.1} parent=39 // pred_check
          %p275 = pneg %p115
        $region54: #{forward.1} parent=39 // pred_check_branch
          %277 = sbr.rel (%p275) target = $region56
        $region55: #{forward.1} parent=39 // pred_region
          %278 = dma.done [#allocation9], 1024
        $region56: #{forward.1} parent=39 // pred_fallthru
          _
        %s279 = sand.u32 %s34, 1
        %s280 = scalar_lea.sflag [#allocation3], %s279
        %s281 = sand.u32 %s34, 1
        %s282 = smul.addr %s281, 8
        %s283 = scalar_lea.vmem [#allocation2], %s282
        %p284 = pneg %p47
        %p285 = pneg %p44
        %s286 = sand.u32 %s26, 1
        %s287 = scalar_lea.sflag [#allocation6], %s286
        %s288 = sand.u32 %s60, 1
        %s289 = smul.addr %s288, 8
        %s290 = scalar_lea.vmem [#allocation5], %s289
        %p291 = pneg %p73
        %p292 = pneg %p70
        %p293 = pneg %p94
        %p294 = pneg %p91
        %p295 = pneg %p115
        %p296 = pneg %p112
        %p297 = pneg %p136
        %p298 = pneg %p133
        %p299 = pneg %p162
        %p300 = pneg %p159
        %s301 = sand.u32 %s149, 1
        %s302 = scalar_lea.sflag [#allocation4], %s301
        %s303 = sand.u32 %s149, 1
        %s304 = smul.addr %s303, 8
        %s305 = scalar_lea.vmem [#allocation10], %s304
        %v307 = vld [vmem:[%s257] sm:$0xff]
        %v308 = vpack.c.bf16 %v307, %v307
        %v309 = vld [vmem:[#allocation7] sm:$0xf]
        %v310 = vld [vmem:[#allocation7 + $0x4] sm:$0xf]
        %v311 = vld [vmem:[#allocation7 + $0x8] sm:$0xf]
        %v312 = vld [vmem:[#allocation7 + $0xc] sm:$0xf]
        %v313 = vld [vmem:[#allocation7 + $0x10] sm:$0xf]
        %v314 = vld [vmem:[#allocation7 + $0x14] sm:$0xf]
        %v315 = vld [vmem:[#allocation7 + $0x18] sm:$0xf]
        %v316 = vld [vmem:[#allocation7 + $0x1c] sm:$0xf]
        %v317 = vld [vmem:[#allocation7 + $0x20] sm:$0xf]
        %v318 = vld [vmem:[#allocation7 + $0x24] sm:$0xf]
        %v319 = vld [vmem:[#allocation7 + $0x28] sm:$0xf]
        %v320 = vld [vmem:[#allocation7 + $0x2c] sm:$0xf]
        %v321 = vld [vmem:[#allocation7 + $0x30] sm:$0xf]
        %v322 = vld [vmem:[#allocation7 + $0x34] sm:$0xf]
        %v323 = vld [vmem:[#allocation7 + $0x38] sm:$0xf]
        %v324 = vld [vmem:[#allocation7 + $0x3c] sm:$0xf]
        %v325 = vld [vmem:[%s266] sm:$0xff]
        %v326 = vpack.c.bf16 %v325, %v325
        %v327 = vld [vmem:[#allocation8] sm:$0xf]
        %v328 = vld [vmem:[#allocation8 + $0x4] sm:$0xf]
        %v329 = vld [vmem:[#allocation8 + $0x8] sm:$0xf]
        %v330 = vld [vmem:[#allocation8 + $0xc] sm:$0xf]
        %v331 = vld [vmem:[#allocation8 + $0x10] sm:$0xf]
        %v332 = vld [vmem:[#allocation8 + $0x14] sm:$0xf]
        %v333 = vld [vmem:[#allocation8 + $0x18] sm:$0xf]
        %v334 = vld [vmem:[#allocation8 + $0x1c] sm:$0xf]
        %v335 = vld [vmem:[#allocation8 + $0x20] sm:$0xf]
        %v336 = vld [vmem:[#allocation8 + $0x24] sm:$0xf]
        %v337 = vld [vmem:[#allocation8 + $0x28] sm:$0xf]
        %v338 = vld [vmem:[#allocation8 + $0x2c] sm:$0xf]
        %v339 = vld [vmem:[#allocation8 + $0x30] sm:$0xf]
        %v340 = vld [vmem:[#allocation8 + $0x34] sm:$0xf]
        %v341 = vld [vmem:[#allocation8 + $0x38] sm:$0xf]
        %v342 = vld [vmem:[#allocation8 + $0x3c] sm:$0xf]
        %v359 = vunpack.c.l.b16 %v327
        %v360 = vunpack.c.l.b16 %v328
        %v361 = vunpack.c.l.b16 %v329
        %v362 = vunpack.c.l.b16 %v330
        %v363 = vunpack.c.l.b16 %v331
        %v364 = vunpack.c.l.b16 %v332
        %v365 = vunpack.c.l.b16 %v333
        %v366 = vunpack.c.l.b16 %v334
        %v367 = vunpack.c.l.b16 %v335
        %v368 = vunpack.c.l.b16 %v336
        %v369 = vunpack.c.l.b16 %v337
        %v370 = vunpack.c.l.b16 %v338
        %v371 = vunpack.c.l.b16 %v339
        %v372 = vunpack.c.l.b16 %v340
        %v373 = vunpack.c.l.b16 %v341
        %v374 = vunpack.c.l.b16 %v342
        %v375 = vpack.c.b16 %v360, %v359
        %v376 = vpack.c.b16 %v362, %v361
        %v377 = vpack.c.b16 %v364, %v363
        %v378 = vpack.c.b16 %v366, %v365
        %v379 = vpack.c.b16 %v368, %v367
        %v380 = vpack.c.b16 %v370, %v369
        %v381 = vpack.c.b16 %v372, %v371
        %v382 = vpack.c.b16 %v374, %v373
        %391 = vmatprep.subr.bf16.mxu0 0
        %392 = vmatpush1.bf16.msra.mxu0 %v375
        %393 = vmatprep.subr.bf16.mxu0 0
        %394 = vmatpush1.bf16.msra.mxu0 %v376
        %395 = vmatprep.subr.bf16.mxu0 0
        %396 = vmatpush1.bf16.msra.mxu0 %v377
        %397 = vmatprep.subr.bf16.mxu0 0
        %398 = vmatpush1.bf16.msra.mxu0 %v378
        %399 = vmatprep.subr.bf16.mxu0 0
        %400 = vmatpush1.bf16.msra.mxu0 %v379
        %401 = vmatprep.subr.bf16.mxu0 0
        %402 = vmatpush1.bf16.msra.mxu0 %v380
        %403 = vmatprep.subr.bf16.mxu0 0
        %404 = vmatpush1.bf16.msra.mxu0 %v381
        %405 = vmatprep.subr.bf16.mxu0 0
        %406 = vmatpush1.bf16.msra.mxu0 %v382
        %407 = vmatprep.subr.bf16.mxu0 0
        %408 = vmatpush1.bf16.msra.mxu0 0
        %409 = vmatprep.subr.bf16.mxu0 0
        %410 = vmatpush1.bf16.msra.mxu0 0
        %411 = vmatprep.subr.bf16.mxu0 0
        %412 = vmatpush1.bf16.msra.mxu0 0
        %413 = vmatprep.subr.bf16.mxu0 0
        %414 = vmatpush1.bf16.msra.mxu0 0
        %415 = vmatprep.subr.bf16.mxu0 0
        %416 = vmatpush1.bf16.msra.mxu0 0
        %417 = vmatprep.subr.bf16.mxu0 0
        %418 = vmatpush1.bf16.msra.mxu0 0
        %419 = vmatprep.subr.bf16.mxu0 0
        %420 = vmatpush1.bf16.msra.mxu0 0
        %421 = vmatprep.subr.bf16.mxu0 0
        %422 = vmatpush1.bf16.msra.mxu0 0
        %423 = vmatprep.mubr.bf16.mxu0 0
        %424 = vmatmul.mubr.bf16.gmra.mrb[0].mxu0 %v326
        %v425 = vpop.f32.mrb[0].mxu0
        %v426 = vadd.f32 0.0, %v425
        %v427 = vpop.f32.mrb[0].mxu0
        %v428 = vpop.f32.mrb[0].mxu0
        %v429 = vpop.f32.mrb[0].mxu0
        %430 = vdwg.mxu0
        %v447 = vunpack.c.l.b16 %v309
        %v448 = vunpack.c.l.b16 %v310
        %v449 = vunpack.c.l.b16 %v311
        %v450 = vunpack.c.l.b16 %v312
        %v451 = vunpack.c.l.b16 %v313
        %v452 = vunpack.c.l.b16 %v314
        %v453 = vunpack.c.l.b16 %v315
        %v454 = vunpack.c.l.b16 %v316
        %v455 = vunpack.c.l.b16 %v317
        %v456 = vunpack.c.l.b16 %v318
        %v457 = vunpack.c.l.b16 %v319
        %v458 = vunpack.c.l.b16 %v320
        %v459 = vunpack.c.l.b16 %v321
        %v460 = vunpack.c.l.b16 %v322
        %v461 = vunpack.c.l.b16 %v323
        %v462 = vunpack.c.l.b16 %v324
        %v463 = vpack.c.b16 %v448, %v447
        %v464 = vpack.c.b16 %v450, %v449
        %v465 = vpack.c.b16 %v452, %v451
        %v466 = vpack.c.b16 %v454, %v453
        %v467 = vpack.c.b16 %v456, %v455
        %v468 = vpack.c.b16 %v458, %v457
        %v469 = vpack.c.b16 %v460, %v459
        %v470 = vpack.c.b16 %v462, %v461
        %479 = vmatprep.subr.bf16.mxu0 0
        %480 = vmatpush1.bf16.msra.mxu0 %v463
        %481 = vmatprep.subr.bf16.mxu0 0
        %482 = vmatpush1.bf16.msra.mxu0 %v464
        %483 = vmatprep.subr.bf16.mxu0 0
        %484 = vmatpush1.bf16.msra.mxu0 %v465
        %485 = vmatprep.subr.bf16.mxu0 0
        %486 = vmatpush1.bf16.msra.mxu0 %v466
        %487 = vmatprep.subr.bf16.mxu0 0
        %488 = vmatpush1.bf16.msra.mxu0 %v467
        %489 = vmatprep.subr.bf16.mxu0 0
        %490 = vmatpush1.bf16.msra.mxu0 %v468
        %491 = vmatprep.subr.bf16.mxu0 0
        %492 = vmatpush1.bf16.msra.mxu0 %v469
        %493 = vmatprep.subr.bf16.mxu0 0
        %494 = vmatpush1.bf16.msra.mxu0 %v470
        %495 = vmatprep.subr.bf16.mxu0 0
        %496 = vmatpush1.bf16.msra.mxu0 0
        %497 = vmatprep.subr.bf16.mxu0 0
        %498 = vmatpush1.bf16.msra.mxu0 0
        %499 = vmatprep.subr.bf16.mxu0 0
        %500 = vmatpush1.bf16.msra.mxu0 0
        %501 = vmatprep.subr.bf16.mxu0 0
        %502 = vmatpush1.bf16.msra.mxu0 0
        %503 = vmatprep.subr.bf16.mxu0 0
        %504 = vmatpush1.bf16.msra.mxu0 0
        %505 = vmatprep.subr.bf16.mxu0 0
        %506 = vmatpush1.bf16.msra.mxu0 0
        %507 = vmatprep.subr.bf16.mxu0 0
        %508 = vmatpush1.bf16.msra.mxu0 0
        %509 = vmatprep.subr.bf16.mxu0 0
        %510 = vmatpush1.bf16.msra.mxu0 0
        %511 = vmatprep.mubr.bf16.mxu0 0
        %512 = vmatmul.mubr.bf16.gmra.mrb[0].mxu0 %v308
        %v513 = vpop.f32.mrb[0].mxu0
        %v514 = vadd.f32 %v426, %v513
        %v515 = vpop.f32.mrb[0].mxu0
        %v516 = vpop.f32.mrb[0].mxu0
        %v517 = vpop.f32.mrb[0].mxu0
        %518 = vdwg.mxu0
        %v519 = vld [vmem:[%s4] sm:$0x1]
        %v521 = vlaneseq
        %v522 = vshrl.u32 %v521, 7
        %v523 = vsub.s32 0, %v522
        %v524 = vrot.slane %v519, %v523
        %v526 = vadd.f32 %v514, %v524
        %527 = vst [vmem:[%s305] sm:$0xff] %v526
        %s528 = sand.u32 %s149, 1
        %s529 = scalar_lea.sflag [#allocation4], %s528
        %s530 = sand.u32 %s149, 1
        %s531 = smul.addr %s530, 8
        %s532 = scalar_lea.vmem [#allocation10], %s531
        // Predicated region
        $region57: #{forward.1} parent=39 // pred_check
          %p533 = pneg %p159
        $region58: #{forward.1} parent=39 // pred_check_branch
          %535 = sbr.rel (%p533) target = $region60
        $region59: #{forward.1} parent=39 // pred_region
          %s537 = ssub.s32 128, 128
          %538 = vsyncadd %s529, %s537
          %s539 = smul.addr %s26, 128
          %s540 = scalar_lea.hbm %s5, %s539
          %s542 = sshll.u32 %s532, 4
          %s543 = int_to_ptr.vmem [resolvable:$true] %s542
          %545 = dma.vmem_to_hbm [thread:$0]  %s543, 128, %s540, %s529
        $region60: #{forward.1} parent=39 // pred_fallthru
          _
      $region40: #{forward.1} parent=5 // pred_fallthru
        _
      %p546 = scmp.le.s32.totalorder 2, %s21
      // Predicated region
      $region61: #{forward.1} parent=5 // pred_check
        %p547 = pneg %p546
      $region62: #{forward.1} parent=5 // pred_check_branch
        %549 = sbr.rel (%p547) target = $region64
      $region63: #{forward.1} parent=5 // pred_region
        %s550 = ssub.s32 %s21, 2
        // Predicated region
        $region65: #{forward.1} parent=63 // pred_check
          %p551 = pneg %p165
        $region66: #{forward.1} parent=63 // pred_check_branch
          %553 = sbr.rel (%p551) target = $region68
        $region67: #{forward.1} parent=63 // pred_region
          %s554 = sand.u32 %s150, 1
          %s555 = scalar_lea.sflag [#allocation4], %s554
          %s556 = sand.u32 %s150, 1
          %s557 = smul.addr %s556, 8
          %s558 = scalar_lea.vmem [#allocation10], %s557
          %559 = dma.done %s555, 128
        $region68: #{forward.1} parent=63 // pred_fallthru
          _
      $region64: #{forward.1} parent=5 // pred_fallthru
        _
    $region6: #{forward.1} parent=1 // loop_footer
      %s25 = sadd.s32 1, %s21
    $region7: #{forward.1} parent=1 // loop_footer_branch
      %20 = sbr.rel target = $region3
    $region8: #{forward.1} parent=1 // loop_exit
      _
    %560 = vsyncpa [#allocation3], 1
    %s561 = scalar_lea.sflag [#allocation3], 1
    %562 = vsyncpa %s561, 1
    %563 = vsyncpa [#allocation6], 1
    %s564 = scalar_lea.sflag [#allocation6], 1
    %565 = vsyncpa %s564, 1
    %566 = vsyncpa [#allocation9], 1
    %567 = vsyncpa [#allocation4], 1
    %s568 = scalar_lea.sflag [#allocation4], 1
    %569 = vsyncpa %s568, 1

</llo_original>
